<compile_context>
chip_gen: v7x
topology: tpu7x:2x2x1
jax: 0.10.0
libtpu: 0.0.40
codegen_flags: <defaults>
</compile_context>

<pallas_src>
import functools

import numpy as np

import jax
import jax.numpy as jnp
from jax.experimental import pallas as pl
from jax.experimental.pallas import tpu as pltpu

A = 1.0
B = 0.001
TOP_N = 4


# --------------------------------------------------------------------------- MXU lane sums
def _mxu_lane_sum(v):
    """Row-wise lane sum of a (rows, C) f32 array on the (otherwise idle) MXU.

    HIGHEST precision keeps ~f32 accuracy (multi-pass bf16 decomposition); default
    single-pass precision would truncate to bf16 and break the 1e-4 agreement.
    """
    c = v.shape[-1]
    ones = jnp.ones((c, 128), jnp.float32)
    return jnp.dot(v, ones,
                   precision=jax.lax.Precision.HIGHEST,
                   preferred_element_type=jnp.float32)[:, 0:1]


@functools.lru_cache(maxsize=None)
def _mxu_lane_sums_ok(c: int) -> bool:
    """Probe (once per class count) that the MXU lane-sum path lowers AND really
    honours HIGHEST precision on this backend; otherwise use XLU reductions."""
    def probe(x_ref, o_ref):
        o_ref[...] = _mxu_lane_sum(x_ref[...])

    try:
        # Values whose bf16 truncation error is one-sided: a silently-ignored
        # precision flag shows up as ~1e-3 relative error on the row sums.
        x = (1.0 + np.abs(np.sin(np.arange(8 * c, dtype=np.float64))) * 1e-3)
        x = x.astype(np.float32).reshape(8, c)
        got = pl.pallas_call(
            probe, out_shape=jax.ShapeDtypeStruct((8, 1), jnp.float32))(x)
        ref = np.sum(x.astype(np.float64), axis=1, keepdims=True)
        return bool(np.allclose(np.asarray(got), ref, rtol=1e-5, atol=0.0))
    except Exception:
        return False


# --------------------------------------------------------------------------- tiling / VMEM
@functools.lru_cache(maxsize=None)
def _vmem_limit_bytes() -> int:
    """Scoped-VMEM request derived from the actual chip (v5e/v6e: 128 MiB physical,
    v7x: 64 MiB) instead of a universal constant."""
    try:
        phys = getattr(pltpu.get_tpu_info(), "vmem_capacity_bytes", None)
    except Exception:
        phys = None
    if not phys:
        phys = 64 * 1024 * 1024          # conservative fallback: v7x physical VMEM
    return int(min(phys // 2, 64 * 1024 * 1024))


def _pick_row_tile(n: int, c: int, vmem_limit: int) -> int:
    """Largest row tile whose live footprint honestly fits the scoped-VMEM budget.

    Budget ~= live_factor * TN * C * 4 bytes:
      ~6 live full-width (TN, C) f32 temporaries (x, work, col iota, exp/where temps)
      + 2x double-buffered input tile + slack  ->  live_factor = 10.
    Also keep >= 2 row tiles when possible so the "parallel" grid can be split
    across both v7x TensorCores.
    """
    live_factor = 10
    budget_rows = max(8, (vmem_limit * 6 // 10) // (live_factor * 4 * c))
    half = max(8, -(-n // 2))
    for cand in (1024, 512, 256, 128, 64, 32, 16, 8):
        if cand <= budget_rows and cand <= half:
            return cand
    return 8


# --------------------------------------------------------------------------- kernel
def _drsl1_tile_kernel(pred_ref, labels_ref, ce_ref, xmean_ref, *,
                       top_n, tie_safe, use_mxu_sums):
    """One row tile: per-row cross-entropy term and per-row mean of the
    2nd..top_n-th largest logits.  No cross-tile state -> grid axis is parallel."""
    x = pred_ref[...].astype(jnp.float32)                  # upcast only after landing in VMEM
    tn, c = x.shape
    labels = labels_ref[...]                               # (TN, 1) int32
    col = jax.lax.broadcasted_iota(jnp.int32, (tn, c), 1)

    # ---- cross entropy: per-row (logsumexp - label_logit) ----
    row_max = jnp.max(x, axis=-1, keepdims=True)           # (TN, 1)
    e = jnp.exp(x - row_max)                                # (TN, C)
    label_vals = jnp.where(col == labels, x, 0.0)           # (TN, C)
    if use_mxu_sums:
        # Lane sums on the idle MXU (HIGHEST precision) -> 2 fewer XLU reduce passes.
        exp_sum = _mxu_lane_sum(e)
        label_logit = _mxu_lane_sum(label_vals)
    else:
        exp_sum = jnp.sum(e, axis=-1, keepdims=True)
        label_logit = jnp.sum(label_vals, axis=-1, keepdims=True)
    ce_ref[...] = jnp.log(exp_sum) + row_max - label_logit  # (TN, 1) per-row CE term

    # ---- mean of the 2nd..top_n-th largest logits per row ----
    # Iterative argmax masking.  tie_safe=True masks only the first occurrence per pass
    # (bit-exact vs torch.sort when maxima are duplicated) at the cost of one extra
    # min-reduce + compare per pass; tie_safe=False masks all maxima (cheaper, differs
    # only on exact float ties).
    work = x
    cur_max = row_max                                       # k = 0 reuses the CE row max
    topk_sum = jnp.zeros((tn, 1), jnp.float32)
    for k in range(top_n):
        if k > 0:
            cur_max = jnp.max(work, axis=-1, keepdims=True)
            topk_sum = topk_sum + cur_max
        if k < top_n - 1:                                   # last pass never re-reads `work`
            if tie_safe:
                first_idx = jnp.min(jnp.where(work == cur_max, col, c),
                                    axis=-1, keepdims=True)
                work = jnp.where(col == first_idx, -jnp.inf, work)
            else:
                work = jnp.where(work == cur_max, -jnp.inf, work)
    xmean_ref[...] = topk_sum * jnp.float32(1.0 / (top_n - 1))


# --------------------------------------------------------------------------- wrapper
def drsl1_loss(pred, labels, a=A, b=B, top_n=TOP_N, tie_safe=True, row_tile=None):
    n, c = pred.shape
    if not 2 <= top_n <= c:
        raise ValueError("DRSL1 requires 2 <= top_n <= num_classes")

    vmem_limit = _vmem_limit_bytes()
    if row_tile is not None:
        tn = max(8, -(-int(row_tile) // 8) * 8)
    else:
        tn = _pick_row_tile(n, c, vmem_limit)
    n_pad = -(-n // tn) * tn

    labels = labels.astype(jnp.int32)
    if n_pad != n:
        # Pad rows; every per-row quantity is independent, so the junk rows are
        # simply discarded before the tiny epilogue below.
        pred = jnp.pad(pred, ((0, n_pad - n), (0, 0)))
        labels = jnp.pad(labels, (0, n_pad - n))
    labels2d = labels.reshape(n_pad, 1)

    kernel = functools.partial(
        _drsl1_tile_kernel, top_n=top_n, tie_safe=tie_safe,
        use_mxu_sums=_mxu_lane_sums_ok(c))

    # TODO(synk): for very large N, switch the two (N, 1) outputs to a lane-dense
    # (n_tiles, TN) layout to avoid masked vst.msk partial stores (irrelevant at these N).
    ce_rows, xmean_rows = pl.pallas_call(
        kernel,
        out_shape=(jax.ShapeDtypeStruct((n_pad, 1), jnp.float32),
                   jax.ShapeDtypeStruct((n_pad, 1), jnp.float32)),
        grid_spec=pltpu.PrefetchScalarGridSpec(
            num_scalar_prefetch=0,
            grid=(n_pad // tn,),
            in_specs=[
                pl.BlockSpec((tn, c), lambda i: (i, 0)),   # logits tile (native dtype, upcast in-kernel)
                pl.BlockSpec((tn, 1), lambda i: (i, 0)),   # labels tile
            ],
            out_specs=(
                pl.BlockSpec((tn, 1), lambda i: (i, 0)),   # per-row CE term
                pl.BlockSpec((tn, 1), lambda i: (i, 0)),   # per-row x_mean
            ),
        ),
        compiler_params=pltpu.CompilerParams(
            # No cross-tile state -> row axis is genuinely parallel (both v7x TCs usable).
            dimension_semantics=("parallel",),
            vmem_limit_bytes=vmem_limit,
        ),
    )(pred, labels2d)

    # Tiny O(N) epilogue in plain JAX (per review): CE mean + batch-dim log-softmax.
    ce = jnp.mean(ce_rows[:n, 0])
    x_mean = xmean_rows[:n]                                 # (N, 1)
    x = -jax.nn.log_softmax(x_mean, axis=0).sum()
    return jnp.float32(a) * ce + jnp.float32(b) * x


# --------------------------------------------------------------------------- reference
def drsl1_ref(pred, labels, a=A, b=B, top_n=TOP_N):
    """Pure-JAX reference matching the PyTorch module."""
    pred = pred.astype(jnp.float32)
    lse = jax.scipy.special.logsumexp(pred, axis=-1)
    ce = jnp.mean(lse - pred[jnp.arange(pred.shape[0]), labels])
    srt = jnp.sort(pred, axis=-1)
    x_mean = srt[:, -top_n:-1].mean(axis=1).reshape(pred.shape[0], 1)
    x = -jax.nn.log_softmax(x_mean, axis=0).sum()
    return a * ce + b * x


if __name__ == "__main__":
    key = jax.random.PRNGKey(0)

    # Case 1: small shape implied by the module (batch=8, num_classes=32).
    k1, k2 = jax.random.split(key)
    pred = jax.random.normal(k1, (8, 32), dtype=jnp.float32)
    labels = jax.random.randint(k2, (8,), 0, 32, dtype=jnp.int32)
    loss = drsl1_loss(pred, labels)
    jax.block_until_ready(loss)
    ref = drsl1_ref(pred, labels)
    assert jnp.allclose(loss, ref, rtol=1e-4, atol=1e-4), (loss, ref)

    # Case 2: multi-tile parallel grid (forced 128-row tiles -> 4 grid steps).
    k3, k4 = jax.random.split(k1)
    pred2 = jax.random.normal(k3, (512, 64), dtype=jnp.float32)
    labels2 = jax.random.randint(k4, (512,), 0, 64, dtype=jnp.int32)
    loss2 = drsl1_loss(pred2, labels2, row_tile=128)
    jax.block_until_ready(loss2)
    ref2 = drsl1_ref(pred2, labels2)
    assert jnp.allclose(loss2, ref2, rtol=1e-4, atol=1e-4), (loss2, ref2)

    # Case 3: ragged batch (exercises the pad-and-discard path).
    k5, k6 = jax.random.split(k3)
    pred3 = jax.random.normal(k5, (100, 48), dtype=jnp.float32)
    labels3 = jax.random.randint(k6, (100,), 0, 48, dtype=jnp.int32)
    loss3 = drsl1_loss(pred3, labels3)
    jax.block_until_ready(loss3)
    ref3 = drsl1_ref(pred3, labels3)
    assert jnp.allclose(loss3, ref3, rtol=1e-4, atol=1e-4), (loss3, ref3)

    print("KERNEL_OK")
</pallas_src>

<mosaic_0001>
module attributes {stable_mosaic.version = 11 : i64} {
  func.func @probe(%arg0: memref<8x32xf32, #tpu.memory_space<vmem>>, %arg1: memref<8x1xf32, #tpu.memory_space<vmem>>) attributes {dimension_semantics = [], scalar_prefetch = 0 : i64, scratch_operands = 0 : i64, tpu.core_type = #tpu.core_type<tc>} {
    %c0 = arith.constant 0 : index
    %c0_0 = arith.constant 0 : index
    %0 = vector.load %arg0[%c0, %c0_0] : memref<8x32xf32, #tpu.memory_space<vmem>>, vector<8x32xf32>
    %cst = arith.constant 1.000000e+00 : f32
    %1 = vector.broadcast %cst : f32 to vector<32x128xf32>
    %cst_1 = arith.constant dense<0.000000e+00> : vector<8x128xf32>
    %2 = tpu.matmul %0, %1, %cst_1 {dimension_numbers = #tpu.dot_dimension_numbers<[1], [0], [0], [1], [0, 0, 1, 1], [], []>, precision = #tpu.contract_precision<fp32>} : vector<8x32xf32>, vector<32x128xf32>, vector<8x128xf32> -> vector<8x128xf32>
    %3 = vector.extract_strided_slice %2 {offsets = [0, 0], sizes = [8, 1], strides = [1, 1]} : vector<8x128xf32> to vector<8x1xf32>
    %c0_2 = arith.constant 0 : index
    %c0_3 = arith.constant 0 : index
    %4 = vector.load %arg1[%c0_2, %c0_3] : memref<8x1xf32, #tpu.memory_space<vmem>>, vector<8x1xf32>
    tpu.vector_store %arg1[%c0_2, %c0_3], %3 {strides = array<i32>} : memref<8x1xf32, #tpu.memory_space<vmem>>, vector<8x1xf32>,
    return
  }
}

module attributes {stable_mosaic.version = 11 : i64} {
  func.func @_drsl1_tile_kernel(%arg0: i32, %arg1: memref<8x32xf32, #tpu.memory_space<vmem>>, %arg2: memref<8x1xi32, #tpu.memory_space<vmem>>, %arg3: memref<8x1xf32, #tpu.memory_space<vmem>>, %arg4: memref<8x1xf32, #tpu.memory_space<vmem>>) attributes {dimension_semantics = [#tpu.dimension_semantics<parallel>], iteration_bounds = array<i64: 1>, scalar_prefetch = 0 : i64, scratch_operands = 0 : i64, tpu.core_type = #tpu.core_type<tc>, window_params = [{transform_indices = @transform_0, window_bounds = array<i64: 8, 32>}, {transform_indices = @transform_1, window_bounds = array<i64: 8, 1>}, {transform_indices = @transform_2, window_bounds = array<i64: 8, 1>}, {transform_indices = @transform_3, window_bounds = array<i64: 8, 1>}]} {
    %c0 = arith.constant 0 : index
    %c0_0 = arith.constant 0 : index
    %0 = vector.load %arg1[%c0, %c0_0] : memref<8x32xf32, #tpu.memory_space<vmem>>, vector<8x32xf32>
    %c0_1 = arith.constant 0 : index
    %c0_2 = arith.constant 0 : index
    %1 = vector.load %arg2[%c0_1, %c0_2] : memref<8x1xi32, #tpu.memory_space<vmem>>, vector<8x1xi32>
    %2 = tpu.iota {dimensions = array<i32: 1>} : vector<8x32xi32>
    %cst = arith.constant dense<0xFF800000> : vector<8xf32>
    %3 = vector.multi_reduction <maximumf>, %0, %cst [1] : vector<8x32xf32> to vector<8xf32>
    %4 = vector.shape_cast %3 : vector<8xf32> to vector<8x1xf32>
    %5 = vector.broadcast %4 : vector<8x1xf32> to vector<8x32xf32>
    %6 = arith.subf %0, %5 : vector<8x32xf32>
    %7 = math.exp %6 : vector<8x32xf32>
    %8 = vector.broadcast %1 : vector<8x1xi32> to vector<8x32xi32>
    %9 = arith.cmpi eq, %2, %8 : vector<8x32xi32>
    %cst_3 = arith.constant 0.000000e+00 : f32
    %10 = vector.broadcast %cst_3 : f32 to vector<8x32xf32>
    %11 = arith.select %9, %0, %10 : vector<8x32xi1>, vector<8x32xf32>
    %cst_4 = arith.constant dense<0.000000e+00> : vector<8xf32>
    %12 = vector.multi_reduction <add>, %7, %cst_4 [1] : vector<8x32xf32> to vector<8xf32>
    %13 = vector.shape_cast %12 : vector<8xf32> to vector<8x1xf32>
    %cst_5 = arith.constant dense<0.000000e+00> : vector<8xf32>
    %14 = vector.multi_reduction <add>, %11, %cst_5 [1] : vector<8x32xf32> to vector<8xf32>
    %15 = vector.shape_cast %14 : vector<8xf32> to vector<8x1xf32>
    %16 = math.log %13 : vector<8x1xf32>
    %17 = arith.addf %16, %4 : vector<8x1xf32>
    %18 = arith.subf %17, %15 : vector<8x1xf32>
    %c0_6 = arith.constant 0 : index
    %c0_7 = arith.constant 0 : index
    %19 = vector.load %arg3[%c0_6, %c0_7] : memref<8x1xf32, #tpu.memory_space<vmem>>, vector<8x1xf32>
    tpu.vector_store %arg3[%c0_6, %c0_7], %18 {strides = array<i32>} : memref<8x1xf32, #tpu.memory_space<vmem>>, vector<8x1xf32>,
    %cst_8 = arith.constant 0.000000e+00 : f32
    %20 = vector.broadcast %cst_8 : f32 to vector<8x1xf32>
    %21 = vector.broadcast %4 : vector<8x1xf32> to vector<8x32xf32>
    %22 = arith.cmpf oeq, %0, %21 : vector<8x32xf32>
    %c32_i32 = arith.constant 32 : i32
    %23 = vector.broadcast %c32_i32 : i32 to vector<8x32xi32>
    %24 = arith.select %22, %2, %23 : vector<8x32xi1>, vector<8x32xi32>
    %cst_9 = arith.constant dense<2147483647> : vector<8xi32>
    %25 = vector.multi_reduction <minsi>, %24, %cst_9 [1] : vector<8x32xi32> to vector<8xi32>
    %26 = vector.shape_cast %25 : vector<8xi32> to vector<8x1xi32>
    %27 = vector.broadcast %26 : vector<8x1xi32> to vector<8x32xi32>
    %28 = arith.cmpi eq, %2, %27 : vector<8x32xi32>
    %cst_10 = arith.constant 0xFF800000 : f32
    %29 = vector.broadcast %cst_10 : f32 to vector<8x32xf32>
    %30 = arith.select %28, %29, %0 : vector<8x32xi1>, vector<8x32xf32>
    %cst_11 = arith.constant dense<0xFF800000> : vector<8xf32>
    %31 = vector.multi_reduction <maximumf>, %30, %cst_11 [1] : vector<8x32xf32> to vector<8xf32>
    %32 = vector.shape_cast %31 : vector<8xf32> to vector<8x1xf32>
    %33 = arith.addf %20, %32 : vector<8x1xf32>
    %34 = vector.broadcast %32 : vector<8x1xf32> to vector<8x32xf32>
    %35 = arith.cmpf oeq, %30, %34 : vector<8x32xf32>
    %c32_i32_12 = arith.constant 32 : i32
    %36 = vector.broadcast %c32_i32_12 : i32 to vector<8x32xi32>
    %37 = arith.select %35, %2, %36 : vector<8x32xi1>, vector<8x32xi32>
    %cst_13 = arith.constant dense<2147483647> : vector<8xi32>
    %38 = vector.multi_reduction <minsi>, %37, %cst_13 [1] : vector<8x32xi32> to vector<8xi32>
    %39 = vector.shape_cast %38 : vector<8xi32> to vector<8x1xi32>
    %40 = vector.broadcast %39 : vector<8x1xi32> to vector<8x32xi32>
    %41 = arith.cmpi eq, %2, %40 : vector<8x32xi32>
    %cst_14 = arith.constant 0xFF800000 : f32
    %42 = vector.broadcast %cst_14 : f32 to vector<8x32xf32>
    %43 = arith.select %41, %42, %30 : vector<8x32xi1>, vector<8x32xf32>
    %cst_15 = arith.constant dense<0xFF800000> : vector<8xf32>
    %44 = vector.multi_reduction <maximumf>, %43, %cst_15 [1] : vector<8x32xf32> to vector<8xf32>
    %45 = vector.shape_cast %44 : vector<8xf32> to vector<8x1xf32>
    %46 = arith.addf %33, %45 : vector<8x1xf32>
    %47 = vector.broadcast %45 : vector<8x1xf32> to vector<8x32xf32>
    %48 = arith.cmpf oeq, %43, %47 : vector<8x32xf32>
    %c32_i32_16 = arith.constant 32 : i32
    %49 = vector.broadcast %c32_i32_16 : i32 to vector<8x32xi32>
    %50 = arith.select %48, %2, %49 : vector<8x32xi1>, vector<8x32xi32>
    %cst_17 = arith.constant dense<2147483647> : vector<8xi32>
    %51 = vector.multi_reduction <minsi>, %50, %cst_17 [1] : vector<8x32xi32> to vector<8xi32>
    %52 = vector.shape_cast %51 : vector<8xi32> to vector<8x1xi32>
    %53 = vector.broadcast %52 : vector<8x1xi32> to vector<8x32xi32>
    %54 = arith.cmpi eq, %2, %53 : vector<8x32xi32>
    %cst_18 = arith.constant 0xFF800000 : f32
    %55 = vector.broadcast %cst_18 : f32 to vector<8x32xf32>
    %56 = arith.select %54, %55, %43 : vector<8x32xi1>, vector<8x32xf32>
    %cst_19 = arith.constant dense<0xFF800000> : vector<8xf32>
    %57 = vector.multi_reduction <maximumf>, %56, %cst_19 [1] : vector<8x32xf32> to vector<8xf32>
    %58 = vector.shape_cast %57 : vector<8xf32> to vector<8x1xf32>
    %59 = arith.addf %46, %58 : vector<8x1xf32>
    %cst_20 = arith.constant 0.333333343 : f32
    %60 = vector.broadcast %cst_20 : f32 to vector<8x1xf32>
    %61 = arith.mulf %59, %60 : vector<8x1xf32>
    %c0_21 = arith.constant 0 : index
    %c0_22 = arith.constant 0 : index
    %62 = vector.load %arg4[%c0_21, %c0_22] : memref<8x1xf32, #tpu.memory_space<vmem>>, vector<8x1xf32>
    tpu.vector_store %arg4[%c0_21, %c0_22], %61 {strides = array<i32>} : memref<8x1xf32, #tpu.memory_space<vmem>>, vector<8x1xf32>,
    return
  }
  func.func @transform_0(%arg0: i32) -> (i32, i32) {
    %c0_i32 = arith.constant 0 : i32
    %c0_i32_0 = arith.constant 0 : i32
    return %arg0, %c0_i32 : i32, i32
  }
  func.func @transform_1(%arg0: i32) -> (i32, i32) {
    %c0_i32 = arith.constant 0 : i32
    %c0_i32_0 = arith.constant 0 : i32
    return %arg0, %c0_i32 : i32, i32
  }
  func.func @transform_2(%arg0: i32) -> (i32, i32) {
    %c0_i32 = arith.constant 0 : i32
    %c0_i32_0 = arith.constant 0 : i32
    return %arg0, %c0_i32 : i32, i32
  }
  func.func @transform_3(%arg0: i32) -> (i32, i32) {
    %c0_i32 = arith.constant 0 : i32
    %c0_i32_0 = arith.constant 0 : i32
    return %arg0, %c0_i32 : i32, i32
  }
}

</mosaic_0001>

<llo_original>
// kernel: tpu_custom_call.1
$region0: #{tpu_custom_call.1}
  #allocation0 [shape = 'u32[]', space=smem, size = 0x4, offset = 0x4, fixed_abs, tag = 'smem constant byte address 0x4 - core index']
  #allocation1 [shape = 'u32[144,128]{1,0:T(1,128)}', space=vmem, size = 0x12000, scoped, tag = 'internal scratch']
  %s0 = inlined_call_operand.hbm [shape: f32[8,32], index: 0, kind: input, shape index: {}]
  %s1 = inlined_call_operand.vmem [shape: f32[8,1], index: 1, kind: output, shape index: {}]
  %s2 = sld [smem:[#allocation0]]
  $region18: #{tpu_custom_call.1} parent=0
    _
  %s4 = ssub.s32 1, %s2
  %s5 = scalar_select 0, %s4, %s2
  $region1: #{tpu_custom_call.1} parent=0
    #allocation2 [shape = 'u8[4096]{0}', space=vmem, size = 0x1000, scoped, tag = 'input window, operand 0, single buffered']
    #allocation3 [shape = 's32[1]{0}', space=sflag, size = 0x4, scoped, tag = 'scoped memory for tpu_custom_call.1']
    %6 = vsyncpa [#allocation3], 0
    // Predicated region
    $region2: #{tpu_custom_call.1} parent=1 // pred_check
      _
    $region3: #{tpu_custom_call.1} parent=1 // pred_check_branch
      %8 = sbr.rel (0) target = $region5
    $region4: #{tpu_custom_call.1} parent=1 // pred_region
      %s10 = ssub.s32 128, 128
      %11 = vsyncadd [#allocation3], %s10
      %s13 = sshll.u32 [#allocation2], 4
      %s14 = int_to_ptr.vmem [resolvable:$true] %s13
      %16 = dma.hbm_to_vmem [thread:$0]  %s0, 128, %s14, [#allocation3]
    $region5: #{tpu_custom_call.1} parent=1 // pred_fallthru
      _
    // Predicated region
    $region6: #{tpu_custom_call.1} parent=1 // pred_check
      _
    $region7: #{tpu_custom_call.1} parent=1 // pred_check_branch
      %18 = sbr.rel (0) target = $region9
    $region8: #{tpu_custom_call.1} parent=1 // pred_region
      %19 = dma.done [#allocation3], 128
    $region9: #{tpu_custom_call.1} parent=1 // pred_fallthru
      _
    %v20 = vld [vmem:[#allocation2] sm:$0xff]
    %vm21 = vcmask 261120
    %v23 = vsel %vm21, %v20, 0
    %25 = vmatprep.subr.mxu0 0.0
    %26 = vmatpush1.msra.mxu0 1.0
    %27 = vmatprep.subr.mxu0 0.0
    %28 = vmatpush1.msra.mxu0 1.0
    %29 = vmatprep.subr.mxu0 0.0
    %30 = vmatpush1.msra.mxu0 1.0
    %31 = vmatprep.subr.mxu0 0.0
    %32 = vmatpush1.msra.mxu0 1.0
    %33 = vmatprep.subr.mxu0 0.0
    %34 = vmatpush1.msra.mxu0 0.0
    %35 = vmatprep.subr.mxu0 0.0
    %36 = vmatpush1.msra.mxu0 0.0
    %37 = vmatprep.subr.mxu0 0.0
    %38 = vmatpush1.msra.mxu0 0.0
    %39 = vmatprep.subr.mxu0 0.0
    %40 = vmatpush1.msra.mxu0 0.0
    %41 = vmatprep.subr.mxu0 0.0
    %42 = vmatpush1.msra.mxu0 0.0
    %43 = vmatprep.subr.mxu0 0.0
    %44 = vmatpush1.msra.mxu0 0.0
    %45 = vmatprep.subr.mxu0 0.0
    %46 = vmatpush1.msra.mxu0 0.0
    %47 = vmatprep.subr.mxu0 0.0
    %48 = vmatpush1.msra.mxu0 0.0
    %49 = vmatprep.subr.mxu0 0.0
    %50 = vmatpush1.msra.mxu0 0.0
    %51 = vmatprep.subr.mxu0 0.0
    %52 = vmatpush1.msra.mxu0 0.0
    %53 = vmatprep.subr.mxu0 0.0
    %54 = vmatpush1.msra.mxu0 0.0
    %55 = vmatprep.subr.mxu0 0.0
    %56 = vmatpush1.msra.mxu0 0.0
    %57 = vmatprep.subr.mxu0 0.0
    %58 = vmatpush1.msra.mxu0 0.0
    %59 = vmatprep.subr.mxu0 0.0
    %60 = vmatpush1.msra.mxu0 0.0
    %61 = vmatprep.subr.mxu0 0.0
    %62 = vmatpush1.msra.mxu0 0.0
    %63 = vmatprep.subr.mxu0 0.0
    %64 = vmatpush1.msra.mxu0 0.0
    %65 = vmatprep.subr.mxu0 0.0
    %66 = vmatpush1.msra.mxu0 0.0
    %67 = vmatprep.subr.mxu0 0.0
    %68 = vmatpush1.msra.mxu0 0.0
    %69 = vmatprep.subr.mxu0 0.0
    %70 = vmatpush1.msra.mxu0 0.0
    %71 = vmatprep.subr.mxu0 0.0
    %72 = vmatpush1.msra.mxu0 0.0
    %73 = vmatprep.subr.mxu0 0.0
    %74 = vmatpush1.msra.mxu0 0.0
    %75 = vmatprep.subr.mxu0 0.0
    %76 = vmatpush1.msra.mxu0 0.0
    %77 = vmatprep.subr.mxu0 0.0
    %78 = vmatpush1.msra.mxu0 0.0
    %79 = vmatprep.subr.mxu0 0.0
    %80 = vmatpush1.msra.mxu0 0.0
    %81 = vmatprep.subr.mxu0 0.0
    %82 = vmatpush1.msra.mxu0 0.0
    %83 = vmatprep.subr.mxu0 0.0
    %84 = vmatpush1.msra.mxu0 0.0
    %85 = vmatprep.subr.mxu0 0.0
    %86 = vmatpush1.msra.mxu0 0.0
    %87 = vmatprep.subr.mxu0 0.0
    %88 = vmatpush1.msra.mxu0 0.0
    %89 = vmatprep.mubr.f32.mxu0 0.0
    %v90 = vand.u32 %v23, 4294901760
    %v91 = vsub.f32 %v23, %v90
    %v92 = vand.u32 %v91, 4294901760
    %v93 = vsub.f32 %v91, %v92
    %v94 = vand.u32 %v93, 4294901760
    %95 = vmatmul.mubr.f32.gmra.mrb[0].mxu0 %v94
    %v96 = vpop.f32.mrb[0].mxu0
    %v97 = vadd.f32 0.0, %v96
    %v98 = vpop.f32.mrb[0].mxu0
    %99 = vdwg.mxu0
    %100 = vmatprep.subr.mxu0 0.0
    %101 = vmatpush1.msra.mxu0 0.0
    %102 = vmatprep.subr.mxu0 0.0
    %103 = vmatpush1.msra.mxu0 0.0
    %104 = vmatprep.subr.mxu0 0.0
    %105 = vmatpush1.msra.mxu0 0.0
    %106 = vmatprep.subr.mxu0 0.0
    %107 = vmatpush1.msra.mxu0 0.0
    %108 = vmatprep.subr.mxu0 0.0
    %109 = vmatpush1.msra.mxu0 0.0
    %110 = vmatprep.subr.mxu0 0.0
    %111 = vmatpush1.msra.mxu0 0.0
    %112 = vmatprep.subr.mxu0 0.0
    %113 = vmatpush1.msra.mxu0 0.0
    %114 = vmatprep.subr.mxu0 0.0
    %115 = vmatpush1.msra.mxu0 0.0
    %116 = vmatprep.subr.mxu0 0.0
    %117 = vmatpush1.msra.mxu0 0.0
    %118 = vmatprep.subr.mxu0 0.0
    %119 = vmatpush1.msra.mxu0 0.0
    %120 = vmatprep.subr.mxu0 0.0
    %121 = vmatpush1.msra.mxu0 0.0
    %122 = vmatprep.subr.mxu0 0.0
    %123 = vmatpush1.msra.mxu0 0.0
    %124 = vmatprep.subr.mxu0 0.0
    %125 = vmatpush1.msra.mxu0 0.0
    %126 = vmatprep.subr.mxu0 0.0
    %127 = vmatpush1.msra.mxu0 0.0
    %128 = vmatprep.subr.mxu0 0.0
    %129 = vmatpush1.msra.mxu0 0.0
    %130 = vmatprep.subr.mxu0 0.0
    %131 = vmatpush1.msra.mxu0 0.0
    %132 = vmatprep.subr.mxu0 0.0
    %133 = vmatpush1.msra.mxu0 0.0
    %134 = vmatprep.subr.mxu0 0.0
    %135 = vmatpush1.msra.mxu0 0.0
    %136 = vmatprep.subr.mxu0 0.0
    %137 = vmatpush1.msra.mxu0 0.0
    %138 = vmatprep.subr.mxu0 0.0
    %139 = vmatpush1.msra.mxu0 0.0
    %140 = vmatprep.subr.mxu0 0.0
    %141 = vmatpush1.msra.mxu0 0.0
    %142 = vmatprep.subr.mxu0 0.0
    %143 = vmatpush1.msra.mxu0 0.0
    %144 = vmatprep.subr.mxu0 0.0
    %145 = vmatpush1.msra.mxu0 0.0
    %146 = vmatprep.subr.mxu0 0.0
    %147 = vmatpush1.msra.mxu0 0.0
    %148 = vmatprep.subr.mxu0 0.0
    %149 = vmatpush1.msra.mxu0 0.0
    %150 = vmatprep.subr.mxu0 0.0
    %151 = vmatpush1.msra.mxu0 0.0
    %152 = vmatprep.subr.mxu0 0.0
    %153 = vmatpush1.msra.mxu0 0.0
    %154 = vmatprep.subr.mxu0 0.0
    %155 = vmatpush1.msra.mxu0 0.0
    %156 = vmatprep.subr.mxu0 0.0
    %157 = vmatpush1.msra.mxu0 0.0
    %158 = vmatprep.subr.mxu0 0.0
    %159 = vmatpush1.msra.mxu0 0.0
    %160 = vmatprep.subr.mxu0 0.0
    %161 = vmatpush1.msra.mxu0 0.0
    %162 = vmatprep.subr.mxu0 0.0
    %163 = vmatpush1.msra.mxu0 0.0
    %164 = vmatprep.mubr.f32.mxu0 0.0
    %v165 = vand.u32 %v23, 4294901760
    %166 = vmatmul.mubr.f32.gmra.mrb[0].mxu0 %v165
    %v167 = vpop.f32.mrb[0].mxu0
    %v168 = vadd.f32 %v97, %v167
    %v169 = vpop.f32.mrb[0].mxu0
    %170 = vdwg.mxu0
    %171 = vmatprep.subr.mxu0 0.0
    %172 = vmatpush1.msra.mxu0 0.0
    %173 = vmatprep.subr.mxu0 0.0
    %174 = vmatpush1.msra.mxu0 0.0
    %175 = vmatprep.subr.mxu0 0.0
    %176 = vmatpush1.msra.mxu0 0.0
    %177 = vmatprep.subr.mxu0 0.0
    %178 = vmatpush1.msra.mxu0 0.0
    %179 = vmatprep.subr.mxu0 0.0
    %180 = vmatpush1.msra.mxu0 0.0
    %181 = vmatprep.subr.mxu0 0.0
    %182 = vmatpush1.msra.mxu0 0.0
    %183 = vmatprep.subr.mxu0 0.0
    %184 = vmatpush1.msra.mxu0 0.0
    %185 = vmatprep.subr.mxu0 0.0
    %186 = vmatpush1.msra.mxu0 0.0
    %187 = vmatprep.subr.mxu0 0.0
    %188 = vmatpush1.msra.mxu0 0.0
    %189 = vmatprep.subr.mxu0 0.0
    %190 = vmatpush1.msra.mxu0 0.0
    %191 = vmatprep.subr.mxu0 0.0
    %192 = vmatpush1.msra.mxu0 0.0
    %193 = vmatprep.subr.mxu0 0.0
    %194 = vmatpush1.msra.mxu0 0.0
    %195 = vmatprep.subr.mxu0 0.0
    %196 = vmatpush1.msra.mxu0 0.0
    %197 = vmatprep.subr.mxu0 0.0
    %198 = vmatpush1.msra.mxu0 0.0
    %199 = vmatprep.subr.mxu0 0.0
    %200 = vmatpush1.msra.mxu0 0.0
    %201 = vmatprep.subr.mxu0 0.0
    %202 = vmatpush1.msra.mxu0 0.0
    %203 = vmatprep.subr.mxu0 0.0
    %204 = vmatpush1.msra.mxu0 0.0
    %205 = vmatprep.subr.mxu0 0.0
    %206 = vmatpush1.msra.mxu0 0.0
    %207 = vmatprep.subr.mxu0 0.0
    %208 = vmatpush1.msra.mxu0 0.0
    %209 = vmatprep.subr.mxu0 0.0
    %210 = vmatpush1.msra.mxu0 0.0
    %211 = vmatprep.subr.mxu0 0.0
    %212 = vmatpush1.msra.mxu0 0.0
    %213 = vmatprep.subr.mxu0 0.0
    %214 = vmatpush1.msra.mxu0 0.0
    %215 = vmatprep.subr.mxu0 0.0
    %216 = vmatpush1.msra.mxu0 0.0
    %217 = vmatprep.subr.mxu0 0.0
    %218 = vmatpush1.msra.mxu0 0.0
    %219 = vmatprep.subr.mxu0 0.0
    %220 = vmatpush1.msra.mxu0 0.0
    %221 = vmatprep.subr.mxu0 0.0
    %222 = vmatpush1.msra.mxu0 0.0
    %223 = vmatprep.subr.mxu0 0.0
    %224 = vmatpush1.msra.mxu0 0.0
    %225 = vmatprep.subr.mxu0 0.0
    %226 = vmatpush1.msra.mxu0 0.0
    %227 = vmatprep.subr.mxu0 0.0
    %228 = vmatpush1.msra.mxu0 0.0
    %229 = vmatprep.subr.mxu0 0.0
    %230 = vmatpush1.msra.mxu0 0.0
    %231 = vmatprep.subr.mxu0 0.0
    %232 = vmatpush1.msra.mxu0 0.0
    %233 = vmatprep.subr.mxu0 0.0
    %234 = vmatpush1.msra.mxu0 0.0
    %235 = vmatprep.mubr.f32.mxu0 0.0
    %v236 = vand.u32 %v23, 4294901760
    %v237 = vsub.f32 %v23, %v236
    %238 = vmatmul.mubr.f32.gmra.mrb[0].mxu0 %v237
    %v239 = vpop.f32.mrb[0].mxu0
    %v240 = vadd.f32 %v168, %v239
    %v241 = vpop.f32.mrb[0].mxu0
    %242 = vdwg.mxu0
    %243 = vmatprep.subr.mxu0 0.0
    %244 = vmatpush1.msra.mxu0 1.0
    %245 = vmatprep.subr.mxu0 0.0
    %246 = vmatpush1.msra.mxu0 1.0
    %247 = vmatprep.subr.mxu0 0.0
    %248 = vmatpush1.msra.mxu0 1.0
    %249 = vmatprep.subr.mxu0 0.0
    %250 = vmatpush1.msra.mxu0 1.0
    %251 = vmatprep.subr.mxu0 0.0
    %252 = vmatpush1.msra.mxu0 0.0
    %253 = vmatprep.subr.mxu0 0.0
    %254 = vmatpush1.msra.mxu0 0.0
    %255 = vmatprep.subr.mxu0 0.0
    %256 = vmatpush1.msra.mxu0 0.0
    %257 = vmatprep.subr.mxu0 0.0
    %258 = vmatpush1.msra.mxu0 0.0
    %259 = vmatprep.subr.mxu0 0.0
    %260 = vmatpush1.msra.mxu0 0.0
    %261 = vmatprep.subr.mxu0 0.0
    %262 = vmatpush1.msra.mxu0 0.0
    %263 = vmatprep.subr.mxu0 0.0
    %264 = vmatpush1.msra.mxu0 0.0
    %265 = vmatprep.subr.mxu0 0.0
    %266 = vmatpush1.msra.mxu0 0.0
    %267 = vmatprep.subr.mxu0 0.0
    %268 = vmatpush1.msra.mxu0 0.0
    %269 = vmatprep.subr.mxu0 0.0
    %270 = vmatpush1.msra.mxu0 0.0
    %271 = vmatprep.subr.mxu0 0.0
    %272 = vmatpush1.msra.mxu0 0.0
    %273 = vmatprep.subr.mxu0 0.0
    %274 = vmatpush1.msra.mxu0 0.0
    %275 = vmatprep.subr.mxu0 0.0
    %276 = vmatpush1.msra.mxu0 0.0
    %277 = vmatprep.subr.mxu0 0.0
    %278 = vmatpush1.msra.mxu0 0.0
    %279 = vmatprep.subr.mxu0 0.0
    %280 = vmatpush1.msra.mxu0 0.0
    %281 = vmatprep.subr.mxu0 0.0
    %282 = vmatpush1.msra.mxu0 0.0
    %283 = vmatprep.subr.mxu0 0.0
    %284 = vmatpush1.msra.mxu0 0.0
    %285 = vmatprep.subr.mxu0 0.0
    %286 = vmatpush1.msra.mxu0 0.0
    %287 = vmatprep.subr.mxu0 0.0
    %288 = vmatpush1.msra.mxu0 0.0
    %289 = vmatprep.subr.mxu0 0.0
    %290 = vmatpush1.msra.mxu0 0.0
    %291 = vmatprep.subr.mxu0 0.0
    %292 = vmatpush1.msra.mxu0 0.0
    %293 = vmatprep.subr.mxu0 0.0
    %294 = vmatpush1.msra.mxu0 0.0
    %295 = vmatprep.subr.mxu0 0.0
    %296 = vmatpush1.msra.mxu0 0.0
    %297 = vmatprep.subr.mxu0 0.0
    %298 = vmatpush1.msra.mxu0 0.0
    %299 = vmatprep.subr.mxu0 0.0
    %300 = vmatpush1.msra.mxu0 0.0
    %301 = vmatprep.subr.mxu0 0.0
    %302 = vmatpush1.msra.mxu0 0.0
    %303 = vmatprep.subr.mxu0 0.0
    %304 = vmatpush1.msra.mxu0 0.0
    %305 = vmatprep.subr.mxu0 0.0
    %306 = vmatpush1.msra.mxu0 0.0
    %307 = vmatprep.mubr.f32.mxu0 0.0
    %v308 = vand.u32 %v23, 4294901760
    %v309 = vsub.f32 %v23, %v308
    %v310 = vand.u32 %v309, 4294901760
    %311 = vmatmul.mubr.f32.gmra.mrb[0].mxu0 %v310
    %v312 = vpop.f32.mrb[0].mxu0
    %v313 = vadd.f32 %v240, %v312
    %v314 = vpop.f32.mrb[0].mxu0
    %315 = vdwg.mxu0
    %316 = vmatprep.subr.mxu0 0.0
    %317 = vmatpush1.msra.mxu0 0.0
    %318 = vmatprep.subr.mxu0 0.0
    %319 = vmatpush1.msra.mxu0 0.0
    %320 = vmatprep.subr.mxu0 0.0
    %321 = vmatpush1.msra.mxu0 0.0
    %322 = vmatprep.subr.mxu0 0.0
    %323 = vmatpush1.msra.mxu0 0.0
    %324 = vmatprep.subr.mxu0 0.0
    %325 = vmatpush1.msra.mxu0 0.0
    %326 = vmatprep.subr.mxu0 0.0
    %327 = vmatpush1.msra.mxu0 0.0
    %328 = vmatprep.subr.mxu0 0.0
    %329 = vmatpush1.msra.mxu0 0.0
    %330 = vmatprep.subr.mxu0 0.0
    %331 = vmatpush1.msra.mxu0 0.0
    %332 = vmatprep.subr.mxu0 0.0
    %333 = vmatpush1.msra.mxu0 0.0
    %334 = vmatprep.subr.mxu0 0.0
    %335 = vmatpush1.msra.mxu0 0.0
    %336 = vmatprep.subr.mxu0 0.0
    %337 = vmatpush1.msra.mxu0 0.0
    %338 = vmatprep.subr.mxu0 0.0
    %339 = vmatpush1.msra.mxu0 0.0
    %340 = vmatprep.subr.mxu0 0.0
    %341 = vmatpush1.msra.mxu0 0.0
    %342 = vmatprep.subr.mxu0 0.0
    %343 = vmatpush1.msra.mxu0 0.0
    %344 = vmatprep.subr.mxu0 0.0
    %345 = vmatpush1.msra.mxu0 0.0
    %346 = vmatprep.subr.mxu0 0.0
    %347 = vmatpush1.msra.mxu0 0.0
    %348 = vmatprep.subr.mxu0 0.0
    %349 = vmatpush1.msra.mxu0 0.0
    %350 = vmatprep.subr.mxu0 0.0
    %351 = vmatpush1.msra.mxu0 0.0
    %352 = vmatprep.subr.mxu0 0.0
    %353 = vmatpush1.msra.mxu0 0.0
    %354 = vmatprep.subr.mxu0 0.0
    %355 = vmatpush1.msra.mxu0 0.0
    %356 = vmatprep.subr.mxu0 0.0
    %357 = vmatpush1.msra.mxu0 0.0
    %358 = vmatprep.subr.mxu0 0.0
    %359 = vmatpush1.msra.mxu0 0.0
    %360 = vmatprep.subr.mxu0 0.0
    %361 = vmatpush1.msra.mxu0 0.0
    %362 = vmatprep.subr.mxu0 0.0
    %363 = vmatpush1.msra.mxu0 0.0
    %364 = vmatprep.subr.mxu0 0.0
    %365 = vmatpush1.msra.mxu0 0.0
    %366 = vmatprep.subr.mxu0 0.0
    %367 = vmatpush1.msra.mxu0 0.0
    %368 = vmatprep.subr.mxu0 0.0
    %369 = vmatpush1.msra.mxu0 0.0
    %370 = vmatprep.subr.mxu0 0.0
    %371 = vmatpush1.msra.mxu0 0.0
    %372 = vmatprep.subr.mxu0 0.0
    %373 = vmatpush1.msra.mxu0 0.0
    %374 = vmatprep.subr.mxu0 0.0
    %375 = vmatpush1.msra.mxu0 0.0
    %376 = vmatprep.subr.mxu0 0.0
    %377 = vmatpush1.msra.mxu0 0.0
    %378 = vmatprep.subr.mxu0 0.0
    %379 = vmatpush1.msra.mxu0 0.0
    %380 = vmatprep.mubr.f32.mxu0 0.0
    %v381 = vand.u32 %v23, 4294901760
    %382 = vmatmul.mubr.f32.gmra.mrb[0].mxu0 %v381
    %v383 = vpop.f32.mrb[0].mxu0
    %v384 = vadd.f32 %v313, %v383
    %v385 = vpop.f32.mrb[0].mxu0
    %386 = vdwg.mxu0
    %387 = vmatprep.subr.mxu0 0.0
    %388 = vmatpush1.msra.mxu0 1.0
    %389 = vmatprep.subr.mxu0 0.0
    %390 = vmatpush1.msra.mxu0 1.0
    %391 = vmatprep.subr.mxu0 0.0
    %392 = vmatpush1.msra.mxu0 1.0
    %393 = vmatprep.subr.mxu0 0.0
    %394 = vmatpush1.msra.mxu0 1.0
    %395 = vmatprep.subr.mxu0 0.0
    %396 = vmatpush1.msra.mxu0 0.0
    %397 = vmatprep.subr.mxu0 0.0
    %398 = vmatpush1.msra.mxu0 0.0
    %399 = vmatprep.subr.mxu0 0.0
    %400 = vmatpush1.msra.mxu0 0.0
    %401 = vmatprep.subr.mxu0 0.0
    %402 = vmatpush1.msra.mxu0 0.0
    %403 = vmatprep.subr.mxu0 0.0
    %404 = vmatpush1.msra.mxu0 0.0
    %405 = vmatprep.subr.mxu0 0.0
    %406 = vmatpush1.msra.mxu0 0.0
    %407 = vmatprep.subr.mxu0 0.0
    %408 = vmatpush1.msra.mxu0 0.0
    %409 = vmatprep.subr.mxu0 0.0
    %410 = vmatpush1.msra.mxu0 0.0
    %411 = vmatprep.subr.mxu0 0.0
    %412 = vmatpush1.msra.mxu0 0.0
    %413 = vmatprep.subr.mxu0 0.0
    %414 = vmatpush1.msra.mxu0 0.0
    %415 = vmatprep.subr.mxu0 0.0
    %416 = vmatpush1.msra.mxu0 0.0
    %417 = vmatprep.subr.mxu0 0.0
    %418 = vmatpush1.msra.mxu0 0.0
    %419 = vmatprep.subr.mxu0 0.0
    %420 = vmatpush1.msra.mxu0 0.0
    %421 = vmatprep.subr.mxu0 0.0
    %422 = vmatpush1.msra.mxu0 0.0
    %423 = vmatprep.subr.mxu0 0.0
    %424 = vmatpush1.msra.mxu0 0.0
    %425 = vmatprep.subr.mxu0 0.0
    %426 = vmatpush1.msra.mxu0 0.0
    %427 = vmatprep.subr.mxu0 0.0
    %428 = vmatpush1.msra.mxu0 0.0
    %429 = vmatprep.subr.mxu0 0.0
    %430 = vmatpush1.msra.mxu0 0.0
    %431 = vmatprep.subr.mxu0 0.0
    %432 = vmatpush1.msra.mxu0 0.0
    %433 = vmatprep.subr.mxu0 0.0
    %434 = vmatpush1.msra.mxu0 0.0
    %435 = vmatprep.subr.mxu0 0.0
    %436 = vmatpush1.msra.mxu0 0.0
    %437 = vmatprep.subr.mxu0 0.0
    %438 = vmatpush1.msra.mxu0 0.0
    %439 = vmatprep.subr.mxu0 0.0
    %440 = vmatpush1.msra.mxu0 0.0
    %441 = vmatprep.subr.mxu0 0.0
    %442 = vmatpush1.msra.mxu0 0.0
    %443 = vmatprep.subr.mxu0 0.0
    %444 = vmatpush1.msra.mxu0 0.0
    %445 = vmatprep.subr.mxu0 0.0
    %446 = vmatpush1.msra.mxu0 0.0
    %447 = vmatprep.subr.mxu0 0.0
    %448 = vmatpush1.msra.mxu0 0.0
    %449 = vmatprep.subr.mxu0 0.0
    %450 = vmatpush1.msra.mxu0 0.0
    %451 = vmatprep.mubr.f32.mxu0 0.0
    %v452 = vand.u32 %v23, 4294901760
    %453 = vmatmul.mubr.f32.gmra.mrb[0].mxu0 %v452
    %v454 = vpop.f32.mrb[0].mxu0
    %v455 = vadd.f32 %v384, %v454
    %v456 = vpop.f32.mrb[0].mxu0
    %457 = vdwg.mxu0
    %vm458 = vcmask 7168
    %459 = vst.msk [vmem:[%s1] sm:$0xff] %vm458, %v455
    // Predicated region
    $region10: #{tpu_custom_call.1} parent=1 // pred_check
      _
    $region11: #{tpu_custom_call.1} parent=1 // pred_check_branch
      %461 = sbr.rel (0) target = $region13
    $region12: #{tpu_custom_call.1} parent=1 // pred_region
      _
    $region13: #{tpu_custom_call.1} parent=1 // pred_fallthru
      _
    // Predicated region
    $region14: #{tpu_custom_call.1} parent=1 // pred_check
      _
    $region15: #{tpu_custom_call.1} parent=1 // pred_check_branch
      %463 = sbr.rel (0) target = $region17
    $region16: #{tpu_custom_call.1} parent=1 // pred_region
      _
    $region17: #{tpu_custom_call.1} parent=1 // pred_fallthru
      _
    %464 = vsyncpa [#allocation3], 1

// kernel: tpu_custom_call.1
$region0: #{tpu_custom_call.1}
  #allocation0 [shape = 'u32[]', space=smem, size = 0x4, offset = 0x4, fixed_abs, tag = 'smem constant byte address 0x4 - core index']
  #allocation1 [shape = 'u32[144,128]{1,0:T(1,128)}', space=vmem, size = 0x12000, scoped, tag = 'internal scratch']
  %s0 = inlined_call_operand.vmem [shape: f32[8,32], index: 0, kind: input, shape index: {}]
  %s1 = inlined_call_operand.vmem [shape: s32[8,1], index: 1, kind: input, shape index: {}]
  %s2 = inlined_call_operand.vmem [shape: f32[8,1], index: 2, kind: output, shape index: {0}]
  %s3 = inlined_call_operand.vmem [shape: f32[8,1], index: 3, kind: output, shape index: {1}]
  %4 = xla_tuple %s2, %s3
  %s5 = sld [smem:[#allocation0]]
  $region26: #{tpu_custom_call.1} parent=0
    _
  %s7 = ssub.s32 1, %s5
  %s8 = scalar_select 0, %s7, %s5
  // Predicated region
  $region2: #{tpu_custom_call.1} parent=0 // pred_check
    _
  $region3: #{tpu_custom_call.1} parent=0 // pred_check_branch
    %10 = sbr.rel (0) target = $region5
  $region4: #{tpu_custom_call.1} parent=0 // pred_region
    _
  $region5: #{tpu_custom_call.1} parent=0 // pred_fallthru
    _
  // Predicated region
  $region6: #{tpu_custom_call.1} parent=0 // pred_check
    _
  $region7: #{tpu_custom_call.1} parent=0 // pred_check_branch
    %12 = sbr.rel (0) target = $region9
  $region8: #{tpu_custom_call.1} parent=0 // pred_region
    _
  $region9: #{tpu_custom_call.1} parent=0 // pred_fallthru
    _
  %v13 = vld [vmem:[%s0] sm:$0xff]
  %v14 = vld [vmem:[%s1] sm:$0xff]
  %v15 = vlaneseq
  %v16 = vand.u32 %v15, 127
  %vm17 = vcmask 261120
  %v18 = vsel %vm17, %v13, -inf
  %19 = vmax.xlane.f32.xlu0 %v18
  %v20 = vpop.xlane.xlu0 %19
  %v21 = vsub.f32 %v13, %v20
  %v22 = vmul.f32 %v21, 1.442695
  %v23 = vpow.pop %v22
  %24 = vset.pattern.permute.xlu0 0
  %25 = vperm.xlu0 %24, %v14
  %v26 = vpop.permute.xlu0 %25
  %vm27 = vcmp.eq.s32.totalorder %v16, %v26
  %v28 = vsel %vm27, %v13, 0.0
  %v29 = vsel %vm17, %v23, 0.0
  %30 = vadd.xlane.f32.xlu0 %v29
  %v31 = vpop.xlane.xlu0 %30
  %v32 = vsel %vm17, %v28, 0.0
  %33 = vadd.xlane.f32.xlu0 %v32
  %v34 = vpop.xlane.xlu0 %33
  %v35 = vlog2.pop %v31
  %v36 = vmul.f32 %v35, 0.6931472
  %v37 = vadd.f32 %v36, %v20
  %v38 = vsub.f32 %v37, %v34
  %vm39 = vcmask 7168
  %40 = vst.msk [vmem:[%s2] sm:$0xff] %vm39, %v38
  %vm41 = vcmp.eq.f32.partialorder %v13, %v20
  %v42 = vsel %vm41, %v16, 32
  %v43 = vsel %vm17, %v42, 2147483647
  %v44 = vand.u32 %v43, 65535
  %v45 = vshra.s32 %v43, 16
  %v46 = vcvt.s32.f32 %v44
  %v47 = vcvt.s32.f32 %v45
  %48 = vmin.xlane.f32.xlu0 %v47
  %v49 = vpop.xlane.xlu0 %48
  %vm50 = vcmp.eq.f32.partialorder %v47, %v49
  %v51 = vsel %vm50, %v46, inf
  %52 = vmin.xlane.f32.xlu0 %v51
  %v53 = vpop.xlane.xlu0 %52
  %v54 = vcvt.f32.s32 %v53
  %v55 = vcvt.f32.s32 %v49
  %v56 = vshll.u32 %v55, 16
  %v57 = vadd.s32 %v56, %v54
  %vm58 = vcmp.eq.s32.totalorder %v16, %v57
  %v59 = vsel %vm58, -inf, %v13
  %v60 = vsel %vm17, %v59, -inf
  %61 = vmax.xlane.f32.xlu0 %v60
  %v62 = vpop.xlane.xlu0 %61
  %v63 = vadd.f32 %v62, 0.0
  %vm64 = vcmp.eq.f32.partialorder %v59, %v62
  %v65 = vsel %vm64, %v16, 32
  %v66 = vsel %vm17, %v65, 2147483647
  %v67 = vand.u32 %v66, 65535
  %v68 = vshra.s32 %v66, 16
  %v69 = vcvt.s32.f32 %v67
  %v70 = vcvt.s32.f32 %v68
  %71 = vmin.xlane.f32.xlu0 %v70
  %v72 = vpop.xlane.xlu0 %71
  %vm73 = vcmp.eq.f32.partialorder %v70, %v72
  %v74 = vsel %vm73, %v69, inf
  %75 = vmin.xlane.f32.xlu0 %v74
  %v76 = vpop.xlane.xlu0 %75
  %v77 = vcvt.f32.s32 %v76
  %v78 = vcvt.f32.s32 %v72
  %v79 = vshll.u32 %v78, 16
  %v80 = vadd.s32 %v79, %v77
  %vm81 = vcmp.eq.s32.totalorder %v16, %v80
  %v82 = vsel %vm81, -inf, %v59
  %v83 = vsel %vm17, %v82, -inf
  %84 = vmax.xlane.f32.xlu0 %v83
  %v85 = vpop.xlane.xlu0 %84
  %v86 = vadd.f32 %v63, %v85
  %vm87 = vcmp.eq.f32.partialorder %v82, %v85
  %v88 = vsel %vm87, %v16, 32
  %v89 = vsel %vm17, %v88, 2147483647
  %v90 = vand.u32 %v89, 65535
  %v91 = vshra.s32 %v89, 16
  %v92 = vcvt.s32.f32 %v90
  %v93 = vcvt.s32.f32 %v91
  %94 = vmin.xlane.f32.xlu0 %v93
  %v95 = vpop.xlane.xlu0 %94
  %vm96 = vcmp.eq.f32.partialorder %v93, %v95
  %v97 = vsel %vm96, %v92, inf
  %98 = vmin.xlane.f32.xlu0 %v97
  %v99 = vpop.xlane.xlu0 %98
  %v100 = vcvt.f32.s32 %v99
  %v101 = vcvt.f32.s32 %v95
  %v102 = vshll.u32 %v101, 16
  %v103 = vadd.s32 %v102, %v100
  %vm104 = vcmp.eq.s32.totalorder %v16, %v103
  %v105 = vsel %vm104, -inf, %v82
  %v106 = vsel %vm17, %v105, -inf
  %107 = vmax.xlane.f32.xlu0 %v106
  %v108 = vpop.xlane.xlu0 %107
  %v109 = vadd.f32 %v86, %v108
  %v110 = vmul.f32 %v109, 0.33333334
  %111 = vst.msk [vmem:[%s3] sm:$0xff] %vm39, %v110
  // Predicated region
  $region10: #{tpu_custom_call.1} parent=0 // pred_check
    _
  $region11: #{tpu_custom_call.1} parent=0 // pred_check_branch
    %113 = sbr.rel (0) target = $region13
  $region12: #{tpu_custom_call.1} parent=0 // pred_region
    _
  $region13: #{tpu_custom_call.1} parent=0 // pred_fallthru
    _
  // Predicated region
  $region14: #{tpu_custom_call.1} parent=0 // pred_check
    _
  $region15: #{tpu_custom_call.1} parent=0 // pred_check_branch
    %115 = sbr.rel (0) target = $region17
  $region16: #{tpu_custom_call.1} parent=0 // pred_region
    _
  $region17: #{tpu_custom_call.1} parent=0 // pred_fallthru
    _
  // Predicated region
  $region18: #{tpu_custom_call.1} parent=0 // pred_check
    _
  $region19: #{tpu_custom_call.1} parent=0 // pred_check_branch
    %117 = sbr.rel (0) target = $region21
  $region20: #{tpu_custom_call.1} parent=0 // pred_region
    _
  $region21: #{tpu_custom_call.1} parent=0 // pred_fallthru
    _
  // Predicated region
  $region22: #{tpu_custom_call.1} parent=0 // pred_check
    _
  $region23: #{tpu_custom_call.1} parent=0 // pred_check_branch
    %119 = sbr.rel (0) target = $region25
  $region24: #{tpu_custom_call.1} parent=0 // pred_region
    _
  $region25: #{tpu_custom_call.1} parent=0 // pred_fallthru
    _

</llo_original>
